<compile_context>
chip_gen: v7x
topology: tpu7x:2x2x1
jax: 0.10.0
libtpu: 0.0.40
codegen_flags: <defaults>
</compile_context>

<pallas_src>
import numpy as np
import jax
import jax.numpy as jnp
from jax.experimental import pallas as pl
from jax.experimental.pallas import tpu as pltpu

_LANE = 128


def _round_up(v, m):
    return (v + m - 1) // m * m


# --------------------------------------------------------------------------
# Pass 1:  HW2 = ReLU( (A_hat @ X) @ W1 + b1 ) @ W2         (output in bf16)
# --------------------------------------------------------------------------
def _layer1_kernel(a_ref, x_ref, w1_ref, b1_ref, w2_ref, hw2_ref, acc_ref):
    k = pl.program_id(1)

    @pl.when(k == 0)
    def _():
        acc_ref[...] = jnp.zeros_like(acc_ref)

    # Accumulate the memory-bound N x N contraction:  acc += A_tile @ X_tile
    acc_ref[...] += jnp.dot(a_ref[...], x_ref[...],
                            preferred_element_type=jnp.float32)

    @pl.when(k == pl.num_programs(1) - 1)
    def _():
        ax = acc_ref[...]                                        # [tm, Fin_p] f32
        h = jnp.dot(ax, w1_ref[...],
                    preferred_element_type=jnp.float32) + b1_ref[...]
        h = jnp.maximum(h, 0.0)                                  # fused ReLU
        hw2 = jnp.dot(h, w2_ref[...],
                      preferred_element_type=jnp.float32)        # [tm, Fout_p]
        hw2_ref[...] = hw2.astype(hw2_ref.dtype)


# --------------------------------------------------------------------------
# Pass 2:  Y = A_hat @ HW2 + b2
# --------------------------------------------------------------------------
def _layer2_kernel(a_ref, hw2_ref, b2_ref, y_ref, acc_ref):
    k = pl.program_id(1)

    @pl.when(k == 0)
    def _():
        acc_ref[...] = jnp.zeros_like(acc_ref)

    acc_ref[...] += jnp.dot(a_ref[...], hw2_ref[...],
                            preferred_element_type=jnp.float32)

    @pl.when(k == pl.num_programs(1) - 1)
    def _():
        y_ref[...] = (acc_ref[...] + b2_ref[...]).astype(y_ref.dtype)


def _compiler_params():
    return pltpu.CompilerParams(
        dimension_semantics=("parallel", "arbitrary"),
        vmem_limit_bytes=32 * 1024 * 1024,
    )


def _layer1_call(a_p, x_p, w1_p, b1_p, w2_p, *, tm, tk):
    n_pad = a_p.shape[0]
    fin_p = x_p.shape[1]
    hid_p = w1_p.shape[1]
    fout_p = w2_p.shape[1]
    grid = (n_pad // tm, n_pad // tk)
    return pl.pallas_call(
        _layer1_kernel,
        out_shape=jax.ShapeDtypeStruct((n_pad, fout_p), jnp.bfloat16),
        grid_spec=pltpu.PrefetchScalarGridSpec(
            num_scalar_prefetch=0,
            grid=grid,
            in_specs=[
                pl.BlockSpec((tm, tk), lambda i, k: (i, k)),       # A_hat tile
                pl.BlockSpec((tk, fin_p), lambda i, k: (k, 0)),    # X tile
                pl.BlockSpec((fin_p, hid_p), lambda i, k: (0, 0)), # W1 (resident)
                pl.BlockSpec((1, hid_p), lambda i, k: (0, 0)),     # b1
                pl.BlockSpec((hid_p, fout_p), lambda i, k: (0, 0)),# W2 (resident)
            ],
            out_specs=pl.BlockSpec((tm, fout_p), lambda i, k: (i, 0)),
            scratch_shapes=[pltpu.VMEM((tm, fin_p), jnp.float32)],
        ),
        compiler_params=_compiler_params(),
    )(a_p, x_p, w1_p, b1_p, w2_p)


def _layer2_call(a_p, hw2_p, b2_p, *, tm, tk):
    n_pad = a_p.shape[0]
    fout_p = hw2_p.shape[1]
    grid = (n_pad // tm, n_pad // tk)
    return pl.pallas_call(
        _layer2_kernel,
        out_shape=jax.ShapeDtypeStruct((n_pad, fout_p), jnp.float32),
        grid_spec=pltpu.PrefetchScalarGridSpec(
            num_scalar_prefetch=0,
            grid=grid,
            in_specs=[
                pl.BlockSpec((tm, tk), lambda i, k: (i, k)),       # A_hat tile
                pl.BlockSpec((tk, fout_p), lambda i, k: (k, 0)),   # HW2 tile
                pl.BlockSpec((1, fout_p), lambda i, k: (0, 0)),    # b2
            ],
            out_specs=pl.BlockSpec((tm, fout_p), lambda i, k: (i, 0)),
            scratch_shapes=[pltpu.VMEM((tm, fout_p), jnp.float32)],
        ),
        compiler_params=_compiler_params(),
    )(a_p, hw2_p, b2_p)


def gcn_forward(a_hat, x, w1, b1, w2, b2, *, tm=128, tk=128):
    """Full GCN forward. tm/tk: row / reduction tile sizes over the node dim.
    For large graphs use e.g. tm=256, tk=512 (still well under scoped VMEM)."""
    n, fin = x.shape
    hidden = w1.shape[1]
    fout = w2.shape[1]
    assert tm % 8 == 0 and tk % _LANE == 0
    assert (tk % tm == 0) or (tm % tk == 0)

    fin_p = _round_up(fin, _LANE)
    hid_p = _round_up(hidden, _LANE)
    fout_p = _round_up(fout, _LANE)
    n_pad = _round_up(n, max(tm, tk))

    # Lane-dense, zero-padded operands; A_hat / X in bf16 (f32 accumulation in-kernel).
    a_p = jnp.zeros((n_pad, n_pad), jnp.bfloat16).at[:n, :n].set(
        a_hat.astype(jnp.bfloat16))
    x_p = jnp.zeros((n_pad, fin_p), jnp.bfloat16).at[:n, :fin].set(
        x.astype(jnp.bfloat16))
    w1_p = jnp.zeros((fin_p, hid_p), jnp.float32).at[:fin, :hidden].set(w1)
    b1_p = jnp.zeros((1, hid_p), jnp.float32).at[:, :hidden].set(
        b1.reshape(1, hidden))
    w2_p = jnp.zeros((hid_p, fout_p), jnp.float32).at[:hidden, :fout].set(w2)
    b2_p = jnp.zeros((1, fout_p), jnp.float32).at[:, :fout].set(
        b2.reshape(1, fout))

    hw2 = _layer1_call(a_p, x_p, w1_p, b1_p, w2_p, tm=tm, tk=tk)
    y_pad = _layer2_call(a_p, hw2, b2_p, tm=tm, tk=tk)
    return y_pad[:n, :fout]


def build_normalized_adjacency(edge_index, num_nodes):
    """edge_index: [E, 2] list of (src, dst). Returns D^-1/2 (A+I) D^-1/2 (f32)."""
    a = np.zeros((num_nodes, num_nodes), dtype=np.float32)
    for s, d in edge_index:
        a[s, d] = 1.0
        a[d, s] = 1.0                                   # undirected / symmetric
    a += np.eye(num_nodes, dtype=np.float32)            # self-loops
    deg = a.sum(axis=1)
    dinv = 1.0 / np.sqrt(deg)
    a_hat = dinv[:, None] * a * dinv[None, :]
    return jnp.asarray(a_hat, dtype=jnp.float32)


def reference_forward(a_hat, x, w1, b1, w2, b2):
    h = jnp.maximum(a_hat @ (x @ w1) + b1, 0.0)
    return a_hat @ (h @ w2) + b2


if __name__ == "__main__":
    # Ring graph: big enough that the tiled grid has multiple row / k tiles
    # (N=300 -> padded 384 -> 3x3 grid of 128x128 A_hat tiles).
    num_nodes = 300
    in_channels = 8
    hidden = 16          # fixed by the module (GCNConv(in_channels, 16))
    out_channels = 4
    edge_index = [[i, (i + 1) % num_nodes] for i in range(num_nodes)]

    a_hat = build_normalized_adjacency(edge_index, num_nodes)

    key = jax.random.PRNGKey(0)
    kx, k1, k2, kb1, kb2 = jax.random.split(key, 5)
    x = jax.random.normal(kx, (num_nodes, in_channels), dtype=jnp.float32)

    # Deterministic parameter init (glorot-ish scaling); shapes per GCNConv.
    w1 = jax.random.normal(k1, (in_channels, hidden), dtype=jnp.float32) * (
        1.0 / np.sqrt(in_channels))
    b1 = jax.random.normal(kb1, (1, hidden), dtype=jnp.float32) * 0.01
    w2 = jax.random.normal(k2, (hidden, out_channels), dtype=jnp.float32) * (
        1.0 / np.sqrt(hidden))
    b2 = jax.random.normal(kb2, (1, out_channels), dtype=jnp.float32) * 0.01

    out = jax.block_until_ready(gcn_forward(a_hat, x, w1, b1, w2, b2))
    assert out.shape == (num_nodes, out_channels)

    # Reference in f32 math using the same bf16 quantization of A_hat / X that
    # the kernel applies (remaining delta: bf16 MXU rounding + bf16 H@W2 slab).
    a_q = a_hat.astype(jnp.bfloat16).astype(jnp.float32)
    x_q = x.astype(jnp.bfloat16).astype(jnp.float32)
    ref = reference_forward(a_q, x_q, w1, b1, w2, b2)
    np.testing.assert_allclose(np.asarray(out), np.asarray(ref),
                               rtol=2e-2, atol=2e-2)

    print("KERNEL_OK")
</pallas_src>

<mosaic_0001>
module attributes {stable_mosaic.version = 11 : i64} {
  func.func @_layer1_kernel(%arg0: i32, %arg1: i32, %arg2: memref<128x128xbf16, #tpu.memory_space<vmem>>, %arg3: memref<128x128xbf16, #tpu.memory_space<vmem>>, %arg4: memref<128x128xf32, #tpu.memory_space<vmem>>, %arg5: memref<1x128xf32, #tpu.memory_space<vmem>>, %arg6: memref<128x128xf32, #tpu.memory_space<vmem>>, %arg7: memref<128x128xbf16, #tpu.memory_space<vmem>>, %arg8: memref<128x128xf32, #tpu.memory_space<vmem>>) attributes {dimension_semantics = [#tpu.dimension_semantics<parallel>, #tpu.dimension_semantics<arbitrary>], iteration_bounds = array<i64: 3, 3>, scalar_prefetch = 0 : i64, scratch_operands = 1 : i64, tpu.core_type = #tpu.core_type<tc>, window_params = [{transform_indices = @transform_0, window_bounds = array<i64: 128, 128>}, {transform_indices = @transform_1, window_bounds = array<i64: 128, 128>}, {pipeline_mode = #tpu.pipeline_mode<synchronous>, transform_indices = @transform_2, window_bounds = array<i64: 128, 128>}, {pipeline_mode = #tpu.pipeline_mode<synchronous>, transform_indices = @transform_3, window_bounds = array<i64: 1, 128>}, {pipeline_mode = #tpu.pipeline_mode<synchronous>, transform_indices = @transform_4, window_bounds = array<i64: 128, 128>}, {transform_indices = @transform_5, window_bounds = array<i64: 128, 128>}]} {
    %c0_i32 = arith.constant 0 : i32
    %0 = arith.cmpi eq, %arg1, %c0_i32 : i32
    %1 = arith.extui %0 : i1 to i32
    %c0_i32_0 = arith.constant 0 : i32
    %2 = arith.cmpi ne, %1, %c0_i32_0 : i32
    scf.if %2 {
      %cst_9 = arith.constant 0.000000e+00 : f32
      %12 = vector.broadcast %cst_9 : f32 to vector<128x128xf32>
      %c0_10 = arith.constant 0 : index
      %c0_11 = arith.constant 0 : index
      %13 = vector.load %arg8[%c0_10, %c0_11] : memref<128x128xf32, #tpu.memory_space<vmem>>, vector<128x128xf32>
      tpu.vector_store %arg8[%c0_10, %c0_11], %12 {strides = array<i32>} : memref<128x128xf32, #tpu.memory_space<vmem>>, vector<128x128xf32>,
    } else {
    }
    %c0 = arith.constant 0 : index
    %c0_1 = arith.constant 0 : index
    %3 = vector.load %arg8[%c0, %c0_1] : memref<128x128xf32, #tpu.memory_space<vmem>>, vector<128x128xf32>
    %c0_2 = arith.constant 0 : index
    %c0_3 = arith.constant 0 : index
    %4 = vector.load %arg2[%c0_2, %c0_3] : memref<128x128xbf16, #tpu.memory_space<vmem>>, vector<128x128xbf16>
    %c0_4 = arith.constant 0 : index
    %c0_5 = arith.constant 0 : index
    %5 = vector.load %arg3[%c0_4, %c0_5] : memref<128x128xbf16, #tpu.memory_space<vmem>>, vector<128x128xbf16>
    %cst = arith.constant dense<0.000000e+00> : vector<128x128xf32>
    %6 = tpu.matmul %4, %5, %cst {dimension_numbers = #tpu.dot_dimension_numbers<[1], [0], [0], [1], [0, 0, 1, 1], [], []>} : vector<128x128xbf16>, vector<128x128xbf16>, vector<128x128xf32> -> vector<128x128xf32>
    %7 = arith.addf %3, %6 : vector<128x128xf32>
    %c0_6 = arith.constant 0 : index
    %c0_7 = arith.constant 0 : index
    %8 = vector.load %arg8[%c0_6, %c0_7] : memref<128x128xf32, #tpu.memory_space<vmem>>, vector<128x128xf32>
    tpu.vector_store %arg8[%c0_6, %c0_7], %7 {strides = array<i32>} : memref<128x128xf32, #tpu.memory_space<vmem>>, vector<128x128xf32>,
    %c2_i32 = arith.constant 2 : i32
    %9 = arith.cmpi eq, %arg1, %c2_i32 : i32
    %10 = arith.extui %9 : i1 to i32
    %c0_i32_8 = arith.constant 0 : i32
    %11 = arith.cmpi ne, %10, %c0_i32_8 : i32
    scf.if %11 {
      %c0_9 = arith.constant 0 : index
      %c0_10 = arith.constant 0 : index
      %12 = vector.load %arg8[%c0_9, %c0_10] : memref<128x128xf32, #tpu.memory_space<vmem>>, vector<128x128xf32>
      %c0_11 = arith.constant 0 : index
      %c0_12 = arith.constant 0 : index
      %13 = vector.load %arg4[%c0_11, %c0_12] : memref<128x128xf32, #tpu.memory_space<vmem>>, vector<128x128xf32>
      %cst_13 = arith.constant dense<0.000000e+00> : vector<128x128xf32>
      %14 = tpu.matmul %12, %13, %cst_13 {dimension_numbers = #tpu.dot_dimension_numbers<[1], [0], [0], [1], [0, 0, 1, 1], [], []>} : vector<128x128xf32>, vector<128x128xf32>, vector<128x128xf32> -> vector<128x128xf32>
      %c0_14 = arith.constant 0 : index
      %c0_15 = arith.constant 0 : index
      %15 = vector.load %arg5[%c0_14, %c0_15] : memref<1x128xf32, #tpu.memory_space<vmem>>, vector<1x128xf32>
      %16 = vector.broadcast %15 : vector<1x128xf32> to vector<128x128xf32>
      %17 = arith.addf %14, %16 : vector<128x128xf32>
      %cst_16 = arith.constant 0.000000e+00 : f32
      %18 = vector.broadcast %cst_16 : f32 to vector<128x128xf32>
      %19 = arith.maximumf %17, %18 : vector<128x128xf32>
      %c0_17 = arith.constant 0 : index
      %c0_18 = arith.constant 0 : index
      %20 = vector.load %arg6[%c0_17, %c0_18] : memref<128x128xf32, #tpu.memory_space<vmem>>, vector<128x128xf32>
      %cst_19 = arith.constant dense<0.000000e+00> : vector<128x128xf32>
      %21 = tpu.matmul %19, %20, %cst_19 {dimension_numbers = #tpu.dot_dimension_numbers<[1], [0], [0], [1], [0, 0, 1, 1], [], []>} : vector<128x128xf32>, vector<128x128xf32>, vector<128x128xf32> -> vector<128x128xf32>
      %22 = arith.truncf %21 : vector<128x128xf32> to vector<128x128xbf16>
      %c0_20 = arith.constant 0 : index
      %c0_21 = arith.constant 0 : index
      %23 = vector.load %arg7[%c0_20, %c0_21] : memref<128x128xbf16, #tpu.memory_space<vmem>>, vector<128x128xbf16>
      tpu.vector_store %arg7[%c0_20, %c0_21], %22 {strides = array<i32>} : memref<128x128xbf16, #tpu.memory_space<vmem>>, vector<128x128xbf16>,
    } else {
    }
    return
  }
  func.func @transform_0(%arg0: i32, %arg1: i32) -> (i32, i32) {
    %c0_i32 = arith.constant 0 : i32
    return %arg0, %arg1 : i32, i32
  }
  func.func @transform_1(%arg0: i32, %arg1: i32) -> (i32, i32) {
    %c0_i32 = arith.constant 0 : i32
    %c0_i32_0 = arith.constant 0 : i32
    return %arg1, %c0_i32 : i32, i32
  }
  func.func @transform_2(%arg0: i32, %arg1: i32) -> (i32, i32) {
    %c0_i32 = arith.constant 0 : i32
    %c0_i32_0 = arith.constant 0 : i32
    %c0_i32_1 = arith.constant 0 : i32
    return %c0_i32, %c0_i32_0 : i32, i32
  }
  func.func @transform_3(%arg0: i32, %arg1: i32) -> (i32, i32) {
    %c0_i32 = arith.constant 0 : i32
    %c0_i32_0 = arith.constant 0 : i32
    %c0_i32_1 = arith.constant 0 : i32
    return %c0_i32, %c0_i32_0 : i32, i32
  }
  func.func @transform_4(%arg0: i32, %arg1: i32) -> (i32, i32) {
    %c0_i32 = arith.constant 0 : i32
    %c0_i32_0 = arith.constant 0 : i32
    %c0_i32_1 = arith.constant 0 : i32
    return %c0_i32, %c0_i32_0 : i32, i32
  }
  func.func @transform_5(%arg0: i32, %arg1: i32) -> (i32, i32) {
    %c0_i32 = arith.constant 0 : i32
    %c0_i32_0 = arith.constant 0 : i32
    return %arg0, %c0_i32 : i32, i32
  }
}

</mosaic_0001>

<llo_original>
// kernel: tpu_custom_call.1
$region0: #{tpu_custom_call.1}
  #allocation0 [shape = 'u32[]', space=smem, size = 0x4, offset = 0x4, fixed_abs, tag = 'smem constant byte address 0x4 - core index']
  #allocation1 [shape = 'u32[144,128]{1,0:T(1,128)}', space=vmem, size = 0x12000, scoped, tag = 'internal scratch']
  #allocation2 [shape = 'f32[128,128]{1,0:T(8,128)}', space=vmem, size = 0x10000, scoped, tag = 'scratch operand']
  %s0 = inlined_call_operand.hbm [shape: bf16[384,384], index: 0, kind: input, shape index: {}]
  %s1 = inlined_call_operand.hbm [shape: bf16[384,128], index: 1, kind: input, shape index: {}]
  %s2 = inlined_call_operand.hbm [shape: f32[128,128], index: 2, kind: input, shape index: {}]
  %s3 = inlined_call_operand.vmem [shape: f32[1,128], index: 3, kind: input, shape index: {}]
  %s4 = inlined_call_operand.hbm [shape: f32[128,128], index: 4, kind: input, shape index: {}]
  %s5 = inlined_call_operand.hbm [shape: bf16[384,128], index: 5, kind: output, shape index: {}]
  %s6 = sld [smem:[#allocation0]]
  $region77: #{tpu_custom_call.1} parent=0
    _
  %s8 = ssub.s32 1, %s6
  %s9 = scalar_select 0, %s8, %s6
  $region1: #{tpu_custom_call.1} parent=0
    #allocation3 [shape = 'u8[65536]{0}', space=vmem, size = 0x10000, scoped, tag = 'input window, operand 0']
    #allocation4 [shape = 's32[2]{0}', space=sflag, size = 0x8, scoped, tag = 'scoped memory for tpu_custom_call.1']
    #allocation5 [shape = 's32[2]{0}', space=sflag, size = 0x8, scoped, tag = 'scoped memory for tpu_custom_call.1']
    #allocation6 [shape = 'u8[65536]{0}', space=vmem, size = 0x10000, scoped, tag = 'input window, operand 1']
    #allocation7 [shape = 's32[2]{0}', space=sflag, size = 0x8, scoped, tag = 'scoped memory for tpu_custom_call.1']
    #allocation8 [shape = 'u8[65536]{0}', space=vmem, size = 0x10000, scoped, tag = 'input window, operand 2, single buffered']
    #allocation9 [shape = 'u8[65536]{0}', space=vmem, size = 0x10000, scoped, tag = 'input window, operand 4, single buffered']
    #allocation10 [shape = 's32[1]{0}', space=sflag, size = 0x4, scoped, tag = 'scoped memory for tpu_custom_call.1']
    #allocation11 [shape = 'u8[65536]{0}', space=vmem, size = 0x10000, scoped, tag = 'output window, operand 0']
    %10 = vsyncpa [#allocation4], 0
    %s11 = scalar_lea.sflag [#allocation4], 1
    %12 = vsyncpa %s11, 0
    %13 = vsyncpa [#allocation7], 0
    %s14 = scalar_lea.sflag [#allocation7], 1
    %15 = vsyncpa %s14, 0
    %16 = vsyncpa [#allocation10], 0
    %17 = vsyncpa [#allocation5], 0
    %s18 = scalar_lea.sflag [#allocation5], 1
    %19 = vsyncpa %s18, 0
    loop: start=0, step=1, limit=11
    $region2: #{tpu_custom_call.1} parent=1 // loop_pre_header
      _
    $region3: #{tpu_custom_call.1} parent=1 // loop_header
      %s21 = sphi 0, %s25
      %p22 = scmp.ge.s32.totalorder %s21, 11
      %s28 = sphi 0, %s40
      %s29 = sphi 0, %s36
      %s30 = sphi 0, %s28
      %s31 = sphi 0, %s29
      %s32 = sphi 0, %s30
      %s33 = sphi 0, %s31
      %s45 = sphi 0, %s47
      %s48 = sphi 0, %s45
      %s49 = sphi 0, %s48
      %s65 = sphi 0, %s49
      %s71 = sphi 0, %s73
      %s74 = sphi 0, %s71
      %s75 = sphi 0, %s74
      %s91 = sphi 0, %s75
      %s95 = sphi 0, %s95
      %s97 = sphi 0, %s95
      %s98 = sphi 0, %s97
      %s112 = sphi 0, %s98
      %s116 = sphi 0, %s116
      %s118 = sphi 0, %s116
      %s119 = sphi 0, %s118
      %s133 = sphi 0, %s119
      %s137 = sphi 0, %s137
      %s139 = sphi 0, %s137
      %s140 = sphi 0, %s139
      %s154 = sphi 0, %s140
      %s160 = sphi 0, %s162
      %s163 = sphi 0, %s160
      %s164 = sphi 0, %s163
      %s180 = sphi 0, %s164
    $region4: #{tpu_custom_call.1} parent=1 // loop_header_branch
      %24 = sbr.rel (%p22) target = $region8
    $region5: #{tpu_custom_call.1} parent=1 // loop_body
      %s26 = ssub.s32 %s21, 1
      %s27 = ssub.s32 %s21, 2
      %s34 = sadd.s32 1, %s29
      %p35 = scmp.ge.s32.totalorder %s34, 3
      %s36 = scalar_select %p35, 0, %s34
      %s37 = sadd.s32 1, %s28
      %s38 = scalar_select %p35, %s37, %s28
      %p39 = scmp.ge.s32.totalorder %s38, 3
      %s40 = scalar_select %p39, 0, %s38
      %s41 = ssub.s32 %s28, %s40
      %s42 = ssub.s32 %s29, %s36
      %s43 = sor.u32 %s41, %s42
      %p44 = scmp.eq.s32.totalorder %s43, 0
      %s46 = sadd.s32 %s45, 1
      %s47 = scalar_select %p44, %s45, %s46
      %p50 = pneg %p44
      %p51 = scmp.eq.s32.totalorder %s21, 8
      %p52 = por %p50, %p51
      %p53 = scmp.ne.s32.totalorder %s45, %s48
      %p54 = scmp.eq.s32.totalorder %s21, 0
      %p55 = por %p53, %p54
      %p56 = scmp.ne.s32.totalorder %s45, %s48
      %p57 = scmp.eq.s32.totalorder %s26, 8
      %p58 = por %p56, %p57
      %p59 = scmp.ne.s32.totalorder %s48, %s49
      %p60 = scmp.eq.s32.totalorder %s26, 0
      %p61 = por %p59, %p60
      %p62 = scmp.ne.s32.totalorder %s48, %s49
      %p63 = scmp.eq.s32.totalorder %s27, 8
      %p64 = por %p62, %p63
      %p66 = scmp.ne.s32.totalorder %s49, %s65
      %p67 = scmp.eq.s32.totalorder %s27, 0
      %p68 = por %p66, %p67
      %s69 = ssub.s32 %s29, %s36
      %p70 = scmp.eq.s32.totalorder %s69, 0
      %s72 = sadd.s32 %s71, 1
      %s73 = scalar_select %p70, %s71, %s72
      %p76 = pneg %p70
      %p77 = scmp.eq.s32.totalorder %s21, 8
      %p78 = por %p76, %p77
      %p79 = scmp.ne.s32.totalorder %s71, %s74
      %p80 = scmp.eq.s32.totalorder %s21, 0
      %p81 = por %p79, %p80
      %p82 = scmp.ne.s32.totalorder %s71, %s74
      %p83 = scmp.eq.s32.totalorder %s26, 8
      %p84 = por %p82, %p83
      %p85 = scmp.ne.s32.totalorder %s74, %s75
      %p86 = scmp.eq.s32.totalorder %s26, 0
      %p87 = por %p85, %p86
      %p88 = scmp.ne.s32.totalorder %s74, %s75
      %p89 = scmp.eq.s32.totalorder %s27, 8
      %p90 = por %p88, %p89
      %p92 = scmp.ne.s32.totalorder %s75, %s91
      %p93 = scmp.eq.s32.totalorder %s27, 0
      %p94 = por %p92, %p93
      %s96 = sadd.s32 %s95, 1
      %p99 = scmp.eq.s32.totalorder %s21, 8
      %p100 = scmp.ne.s32.totalorder %s95, %s97
      %p101 = scmp.eq.s32.totalorder %s21, 0
      %p102 = por %p100, %p101
      %p103 = scmp.ne.s32.totalorder %s95, %s97
      %p104 = scmp.eq.s32.totalorder %s26, 8
      %p105 = por %p103, %p104
      %p106 = scmp.ne.s32.totalorder %s97, %s98
      %p107 = scmp.eq.s32.totalorder %s26, 0
      %p108 = por %p106, %p107
      %p109 = scmp.ne.s32.totalorder %s97, %s98
      %p110 = scmp.eq.s32.totalorder %s27, 8
      %p111 = por %p109, %p110
      %p113 = scmp.ne.s32.totalorder %s98, %s112
      %p114 = scmp.eq.s32.totalorder %s27, 0
      %p115 = por %p113, %p114
      %s117 = sadd.s32 %s116, 1
      %p120 = scmp.eq.s32.totalorder %s21, 8
      %p121 = scmp.ne.s32.totalorder %s116, %s118
      %p122 = scmp.eq.s32.totalorder %s21, 0
      %p123 = por %p121, %p122
      %p124 = scmp.ne.s32.totalorder %s116, %s118
      %p125 = scmp.eq.s32.totalorder %s26, 8
      %p126 = por %p124, %p125
      %p127 = scmp.ne.s32.totalorder %s118, %s119
      %p128 = scmp.eq.s32.totalorder %s26, 0
      %p129 = por %p127, %p128
      %p130 = scmp.ne.s32.totalorder %s118, %s119
      %p131 = scmp.eq.s32.totalorder %s27, 8
      %p132 = por %p130, %p131
      %p134 = scmp.ne.s32.totalorder %s119, %s133
      %p135 = scmp.eq.s32.totalorder %s27, 0
      %p136 = por %p134, %p135
      %s138 = sadd.s32 %s137, 1
      %p141 = scmp.eq.s32.totalorder %s21, 8
      %p142 = scmp.ne.s32.totalorder %s137, %s139
      %p143 = scmp.eq.s32.totalorder %s21, 0
      %p144 = por %p142, %p143
      %p145 = scmp.ne.s32.totalorder %s137, %s139
      %p146 = scmp.eq.s32.totalorder %s26, 8
      %p147 = por %p145, %p146
      %p148 = scmp.ne.s32.totalorder %s139, %s140
      %p149 = scmp.eq.s32.totalorder %s26, 0
      %p150 = por %p148, %p149
      %p151 = scmp.ne.s32.totalorder %s139, %s140
      %p152 = scmp.eq.s32.totalorder %s27, 8
      %p153 = por %p151, %p152
      %p155 = scmp.ne.s32.totalorder %s140, %s154
      %p156 = scmp.eq.s32.totalorder %s27, 0
      %p157 = por %p155, %p156
      %s158 = ssub.s32 %s28, %s40
      %p159 = scmp.eq.s32.totalorder %s158, 0
      %s161 = sadd.s32 %s160, 1
      %s162 = scalar_select %p159, %s160, %s161
      %p165 = pneg %p159
      %p166 = scmp.eq.s32.totalorder %s21, 8
      %p167 = por %p165, %p166
      %p168 = scmp.ne.s32.totalorder %s160, %s163
      %p169 = scmp.eq.s32.totalorder %s21, 0
      %p170 = por %p168, %p169
      %p171 = scmp.ne.s32.totalorder %s160, %s163
      %p172 = scmp.eq.s32.totalorder %s26, 8
      %p173 = por %p171, %p172
      %p174 = scmp.ne.s32.totalorder %s163, %s164
      %p175 = scmp.eq.s32.totalorder %s26, 0
      %p176 = por %p174, %p175
      %p177 = scmp.ne.s32.totalorder %s163, %s164
      %p178 = scmp.eq.s32.totalorder %s27, 8
      %p179 = por %p177, %p178
      %p181 = scmp.ne.s32.totalorder %s164, %s180
      %p182 = scmp.eq.s32.totalorder %s27, 0
      %p183 = por %p181, %p182
      %p184 = scmp.le.s32.totalorder 1, %s21
      %p185 = scmp.lt.s32.totalorder %s21, 10
      %p186 = pnand %p184, %p185
      %p187 = pneg %p186
      // Predicated region
      $region9: #{tpu_custom_call.1} parent=5 // pred_check
        _
      $region10: #{tpu_custom_call.1} parent=5 // pred_check_branch
        %189 = sbr.rel (%p186) target = $region12
      $region11: #{tpu_custom_call.1} parent=5 // pred_region
        %s190 = ssub.s32 %s21, 1
        // Predicated region
        $region13: #{tpu_custom_call.1} parent=11 // pred_check
          %p191 = pneg %p108
        $region14: #{tpu_custom_call.1} parent=11 // pred_check_branch
          %193 = sbr.rel (%p191) target = $region16
        $region15: #{tpu_custom_call.1} parent=11 // pred_region
          %s195 = ssub.s32 2048, 2048
          %196 = vsyncadd [#allocation7], %s195
          %s197 = sshll.u32 [#allocation8], 4
          %s198 = int_to_ptr.vmem [resolvable:$true] %s197
          %203 = dma.hbm_to_vmem [thread:$0]  %s2, 2048, %s198, [#allocation7], 128, 128, 8
        $region16: #{tpu_custom_call.1} parent=11 // pred_fallthru
          _
        // Predicated region
        $region17: #{tpu_custom_call.1} parent=11 // pred_check
          %p204 = pneg %p129
        $region18: #{tpu_custom_call.1} parent=11 // pred_check_branch
          %206 = sbr.rel (%p204) target = $region20
        $region19: #{tpu_custom_call.1} parent=11 // pred_region
          _
        $region20: #{tpu_custom_call.1} parent=11 // pred_fallthru
          _
        // Predicated region
        $region21: #{tpu_custom_call.1} parent=11 // pred_check
          %p207 = pneg %p150
        $region22: #{tpu_custom_call.1} parent=11 // pred_check_branch
          %209 = sbr.rel (%p207) target = $region24
        $region23: #{tpu_custom_call.1} parent=11 // pred_region
          %s211 = ssub.s32 2048, 2048
          %212 = vsyncadd [#allocation10], %s211
          %s213 = sshll.u32 [#allocation9], 4
          %s214 = int_to_ptr.vmem [resolvable:$true] %s213
          %219 = dma.hbm_to_vmem [thread:$0]  %s4, 2048, %s214, [#allocation10], 128, 128, 8
        $region24: #{tpu_custom_call.1} parent=11 // pred_fallthru
          _
      $region12: #{tpu_custom_call.1} parent=5 // pred_fallthru
        _
      %p220 = scmp.lt.s32.totalorder %s21, 9
      // Predicated region
      $region25: #{tpu_custom_call.1} parent=5 // pred_check
        %p221 = pneg %p220
      $region26: #{tpu_custom_call.1} parent=5 // pred_check_branch
        %223 = sbr.rel (%p221) target = $region28
      $region27: #{tpu_custom_call.1} parent=5 // pred_region
        // Predicated region
        $region29: #{tpu_custom_call.1} parent=27 // pred_check
          %p224 = pneg %p55
        $region30: #{tpu_custom_call.1} parent=27 // pred_check_branch
          %226 = sbr.rel (%p224) target = $region32
        $region31: #{tpu_custom_call.1} parent=27 // pred_region
          %s227 = sand.u32 %s45, 1
          %s228 = scalar_lea.sflag [#allocation4], %s227
          %s229 = sand.u32 %s45, 1
          %s230 = smul.addr %s229, 64
          %s231 = scalar_lea.vmem [#allocation3], %s230
          %s232 = smul.u32 16, %s28
          %s234 = ssub.s32 1024, 1024
          %235 = vsyncadd %s228, %s234
          %s236 = smul.addr %s232, 3
          %s237 = sadd.s32 %s29, %s236
          %s238 = smul.addr %s237, 64
          %s239 = scalar_lea.hbm %s0, %s238
          %s240 = sshll.u32 %s231, 4
          %s241 = int_to_ptr.vmem [resolvable:$true] %s240
          %246 = dma.hbm_to_vmem [thread:$0]  %s239, 1024, %s241, %s228, 192, 64, 4
        $region32: #{tpu_custom_call.1} parent=27 // pred_fallthru
          _
        // Predicated region
        $region33: #{tpu_custom_call.1} parent=27 // pred_check
          %p247 = pneg %p81
        $region34: #{tpu_custom_call.1} parent=27 // pred_check_branch
          %249 = sbr.rel (%p247) target = $region36
        $region35: #{tpu_custom_call.1} parent=27 // pred_region
          %s250 = sand.u32 %s21, 1
          %s251 = scalar_lea.sflag [#allocation7], %s250
          %s252 = sand.u32 %s71, 1
          %s253 = smul.addr %s252, 64
          %s254 = scalar_lea.vmem [#allocation6], %s253
          %s255 = smul.u32 16, %s29
          %s257 = ssub.s32 1024, 1024
          %258 = vsyncadd %s251, %s257
          %s259 = smul.addr %s255, 64
          %s260 = scalar_lea.hbm %s1, %s259
          %s261 = sshll.u32 %s254, 4
          %s262 = int_to_ptr.vmem [resolvable:$true] %s261
          %267 = dma.hbm_to_vmem [thread:$0]  %s260, 1024, %s262, %s251, 64, 64, 4
        $region36: #{tpu_custom_call.1} parent=27 // pred_fallthru
          _
      $region28: #{tpu_custom_call.1} parent=5 // pred_fallthru
        _
      %p268 = scmp.le.s32.totalorder 1, %s21
      %p269 = scmp.lt.s32.totalorder %s21, 10
      %p270 = pnand %p268, %p269
      %p271 = pneg %p270
      // Predicated region
      $region37: #{tpu_custom_call.1} parent=5 // pred_check
        _
      $region38: #{tpu_custom_call.1} parent=5 // pred_check_branch
        %273 = sbr.rel (%p270) target = $region40
      $region39: #{tpu_custom_call.1} parent=5 // pred_region
        %s274 = ssub.s32 %s21, 1
        %s275 = sand.u32 %s48, 1
        %s276 = scalar_lea.sflag [#allocation4], %s275
        %s277 = sand.u32 %s48, 1
        %s278 = smul.addr %s277, 64
        %s279 = scalar_lea.vmem [#allocation3], %s278
        // Predicated region
        $region41: #{tpu_custom_call.1} parent=39 // pred_check
          %p280 = pneg %p61
        $region42: #{tpu_custom_call.1} parent=39 // pred_check_branch
          %282 = sbr.rel (%p280) target = $region44
        $region43: #{tpu_custom_call.1} parent=39 // pred_region
          %283 = dma.done %s276, 1024
        $region44: #{tpu_custom_call.1} parent=39 // pred_fallthru
          _
        %s284 = sand.u32 %s26, 1
        %s285 = scalar_lea.sflag [#allocation7], %s284
        %s286 = sand.u32 %s74, 1
        %s287 = smul.addr %s286, 64
        %s288 = scalar_lea.vmem [#allocation6], %s287
        // Predicated region
        $region45: #{tpu_custom_call.1} parent=39 // pred_check
          %p289 = pneg %p87
        $region46: #{tpu_custom_call.1} parent=39 // pred_check_branch
          %291 = sbr.rel (%p289) target = $region48
        $region47: #{tpu_custom_call.1} parent=39 // pred_region
          %292 = dma.done %s285, 1024
        $region48: #{tpu_custom_call.1} parent=39 // pred_fallthru
          _
        // Predicated region
        $region49: #{tpu_custom_call.1} parent=39 // pred_check
          %p293 = pneg %p108
        $region50: #{tpu_custom_call.1} parent=39 // pred_check_branch
          %295 = sbr.rel (%p293) target = $region52
        $region51: #{tpu_custom_call.1} parent=39 // pred_region
          %296 = dma.done [#allocation7], 2048
        $region52: #{tpu_custom_call.1} parent=39 // pred_fallthru
          _
        // Predicated region
        $region53: #{tpu_custom_call.1} parent=39 // pred_check
          %p297 = pneg %p150
        $region54: #{tpu_custom_call.1} parent=39 // pred_check_branch
          %299 = sbr.rel (%p297) target = $region56
        $region55: #{tpu_custom_call.1} parent=39 // pred_region
          %300 = dma.done [#allocation10], 2048
        $region56: #{tpu_custom_call.1} parent=39 // pred_fallthru
          _
        %s301 = sand.u32 %s48, 1
        %s302 = scalar_lea.sflag [#allocation4], %s301
        %s303 = sand.u32 %s48, 1
        %s304 = smul.addr %s303, 64
        %s305 = scalar_lea.vmem [#allocation3], %s304
        %p306 = pneg %p61
        %p307 = pneg %p58
        %s308 = sand.u32 %s26, 1
        %s309 = scalar_lea.sflag [#allocation7], %s308
        %s310 = sand.u32 %s74, 1
        %s311 = smul.addr %s310, 64
        %s312 = scalar_lea.vmem [#allocation6], %s311
        %p313 = pneg %p87
        %p314 = pneg %p84
        %p315 = pneg %p108
        %p316 = pneg %p105
        %p317 = pneg %p129
        %p318 = pneg %p126
        %p319 = pneg %p150
        %p320 = pneg %p147
        %p321 = pneg %p176
        %p322 = pneg %p173
        %s323 = sand.u32 %s163, 1
        %s324 = scalar_lea.sflag [#allocation5], %s323
        %s325 = sand.u32 %s163, 1
        %s326 = smul.addr %s325, 64
        %s327 = scalar_lea.vmem [#allocation11], %s326
        %s328 = smul.u32 16, %s30
        %s329 = smul.u32 16, %s31
        %s330 = smul.u32 16, %s30
        %p332 = scmp.eq.s32.totalorder %s31, 0
        // Predicated region
        $region57: #{tpu_custom_call.1} parent=39 // pred_check
          %p333 = pneg %p332
        $region58: #{tpu_custom_call.1} parent=39 // pred_check_branch
          %335 = sbr.rel (%p333) target = $region60
        $region59: #{tpu_custom_call.1} parent=39 // pred_region
          %336 = vst [vmem:[#allocation2] sm:$0xff] 0.0
          %337 = vst [vmem:[#allocation2 + $0x8] sm:$0xff] 0.0
          %338 = vst [vmem:[#allocation2 + $0x10] sm:$0xff] 0.0
          %339 = vst [vmem:[#allocation2 + $0x18] sm:$0xff] 0.0
          %340 = vst [vmem:[#allocation2 + $0x20] sm:$0xff] 0.0
          %341 = vst [vmem:[#allocation2 + $0x28] sm:$0xff] 0.0
          %342 = vst [vmem:[#allocation2 + $0x30] sm:$0xff] 0.0
          %343 = vst [vmem:[#allocation2 + $0x38] sm:$0xff] 0.0
          %344 = vst [vmem:[#allocation2 + $0x40] sm:$0xff] 0.0
          %345 = vst [vmem:[#allocation2 + $0x48] sm:$0xff] 0.0
          %346 = vst [vmem:[#allocation2 + $0x50] sm:$0xff] 0.0
          %347 = vst [vmem:[#allocation2 + $0x58] sm:$0xff] 0.0
          %348 = vst [vmem:[#allocation2 + $0x60] sm:$0xff] 0.0
          %349 = vst [vmem:[#allocation2 + $0x68] sm:$0xff] 0.0
          %350 = vst [vmem:[#allocation2 + $0x70] sm:$0xff] 0.0
          %351 = vst [vmem:[#allocation2 + $0x78] sm:$0xff] 0.0
        $region60: #{tpu_custom_call.1} parent=39 // pred_fallthru
          _
        %v352 = vld [vmem:[#allocation2] sm:$0xff]
        %v353 = vld [vmem:[#allocation2 + $0x8] sm:$0xff]
        %v354 = vld [vmem:[#allocation2 + $0x10] sm:$0xff]
        %v355 = vld [vmem:[#allocation2 + $0x18] sm:$0xff]
        %v356 = vld [vmem:[#allocation2 + $0x20] sm:$0xff]
        %v357 = vld [vmem:[#allocation2 + $0x28] sm:$0xff]
        %v358 = vld [vmem:[#allocation2 + $0x30] sm:$0xff]
        %v359 = vld [vmem:[#allocation2 + $0x38] sm:$0xff]
        %v360 = vld [vmem:[#allocation2 + $0x40] sm:$0xff]
        %v361 = vld [vmem:[#allocation2 + $0x48] sm:$0xff]
        %v362 = vld [vmem:[#allocation2 + $0x50] sm:$0xff]
        %v363 = vld [vmem:[#allocation2 + $0x58] sm:$0xff]
        %v364 = vld [vmem:[#allocation2 + $0x60] sm:$0xff]
        %v365 = vld [vmem:[#allocation2 + $0x68] sm:$0xff]
        %v366 = vld [vmem:[#allocation2 + $0x70] sm:$0xff]
        %v367 = vld [vmem:[#allocation2 + $0x78] sm:$0xff]
        %v368 = vld [vmem:[%s279] sm:$0xf]
        %v369 = vld [vmem:[%s279 + $0x4] sm:$0xf]
        %v370 = vld [vmem:[%s279 + $0x8] sm:$0xf]
        %v371 = vld [vmem:[%s279 + $0xc] sm:$0xf]
        %v372 = vld [vmem:[%s279 + $0x10] sm:$0xf]
        %v373 = vld [vmem:[%s279 + $0x14] sm:$0xf]
        %v374 = vld [vmem:[%s279 + $0x18] sm:$0xf]
        %v375 = vld [vmem:[%s279 + $0x1c] sm:$0xf]
        %v376 = vld [vmem:[%s279 + $0x20] sm:$0xf]
        %v377 = vld [vmem:[%s279 + $0x24] sm:$0xf]
        %v378 = vld [vmem:[%s279 + $0x28] sm:$0xf]
        %v379 = vld [vmem:[%s279 + $0x2c] sm:$0xf]
        %v380 = vld [vmem:[%s279 + $0x30] sm:$0xf]
        %v381 = vld [vmem:[%s279 + $0x34] sm:$0xf]
        %v382 = vld [vmem:[%s279 + $0x38] sm:$0xf]
        %v383 = vld [vmem:[%s279 + $0x3c] sm:$0xf]
        %v384 = vld [vmem:[%s288] sm:$0xf]
        %v385 = vld [vmem:[%s288 + $0x4] sm:$0xf]
        %v386 = vld [vmem:[%s288 + $0x8] sm:$0xf]
        %v387 = vld [vmem:[%s288 + $0xc] sm:$0xf]
        %v388 = vld [vmem:[%s288 + $0x10] sm:$0xf]
        %v389 = vld [vmem:[%s288 + $0x14] sm:$0xf]
        %v390 = vld [vmem:[%s288 + $0x18] sm:$0xf]
        %v391 = vld [vmem:[%s288 + $0x1c] sm:$0xf]
        %v392 = vld [vmem:[%s288 + $0x20] sm:$0xf]
        %v393 = vld [vmem:[%s288 + $0x24] sm:$0xf]
        %v394 = vld [vmem:[%s288 + $0x28] sm:$0xf]
        %v395 = vld [vmem:[%s288 + $0x2c] sm:$0xf]
        %v396 = vld [vmem:[%s288 + $0x30] sm:$0xf]
        %v397 = vld [vmem:[%s288 + $0x34] sm:$0xf]
        %v398 = vld [vmem:[%s288 + $0x38] sm:$0xf]
        %v399 = vld [vmem:[%s288 + $0x3c] sm:$0xf]
        %v416 = vunpack.c.l.b16 %v368
        %v417 = vunpack.c.l.b16 %v369
        %v418 = vunpack.c.l.b16 %v370
        %v419 = vunpack.c.l.b16 %v371
        %v420 = vunpack.c.l.b16 %v372
        %v421 = vunpack.c.l.b16 %v373
        %v422 = vunpack.c.l.b16 %v374
        %v423 = vunpack.c.l.b16 %v375
        %v424 = vunpack.c.l.b16 %v376
        %v425 = vunpack.c.l.b16 %v377
        %v426 = vunpack.c.l.b16 %v378
        %v427 = vunpack.c.l.b16 %v379
        %v428 = vunpack.c.l.b16 %v380
        %v429 = vunpack.c.l.b16 %v381
        %v430 = vunpack.c.l.b16 %v382
        %v431 = vunpack.c.l.b16 %v383
        %v432 = vpack.c.b16 %v417, %v416
        %v433 = vpack.c.b16 %v419, %v418
        %v434 = vpack.c.b16 %v421, %v420
        %v435 = vpack.c.b16 %v423, %v422
        %v436 = vpack.c.b16 %v425, %v424
        %v437 = vpack.c.b16 %v427, %v426
        %v438 = vpack.c.b16 %v429, %v428
        %v439 = vpack.c.b16 %v431, %v430
        %v464 = vunpack.c.l.b16 %v384
        %v465 = vunpack.c.l.b16 %v385
        %v466 = vunpack.c.l.b16 %v386
        %v467 = vunpack.c.l.b16 %v387
        %v468 = vunpack.c.l.b16 %v388
        %v469 = vunpack.c.l.b16 %v389
        %v470 = vunpack.c.l.b16 %v390
        %v471 = vunpack.c.l.b16 %v391
        %v472 = vunpack.c.l.b16 %v392
        %v473 = vunpack.c.l.b16 %v393
        %v474 = vunpack.c.l.b16 %v394
        %v475 = vunpack.c.l.b16 %v395
        %v476 = vunpack.c.l.b16 %v396
        %v477 = vunpack.c.l.b16 %v397
        %v478 = vunpack.c.l.b16 %v398
        %v479 = vunpack.c.l.b16 %v399
        %v480 = vpack.c.b16 %v465, %v464
        %v481 = vpack.c.b16 %v467, %v466
        %v482 = vpack.c.b16 %v469, %v468
        %v483 = vpack.c.b16 %v471, %v470
        %v484 = vpack.c.b16 %v473, %v472
        %v485 = vpack.c.b16 %v475, %v474
        %v486 = vpack.c.b16 %v477, %v476
        %v487 = vpack.c.b16 %v479, %v478
        %496 = vmatprep.subr.bf16.mxu0 0
        %497 = vmatpush1.bf16.msra.mxu0 %v480
        %498 = vmatprep.subr.bf16.mxu0 0
        %499 = vmatpush1.bf16.msra.mxu0 %v481
        %500 = vmatprep.subr.bf16.mxu0 0
        %501 = vmatpush1.bf16.msra.mxu0 %v482
        %502 = vmatprep.subr.bf16.mxu0 0
        %503 = vmatpush1.bf16.msra.mxu0 %v483
        %504 = vmatprep.subr.bf16.mxu0 0
        %505 = vmatpush1.bf16.msra.mxu0 %v484
        %506 = vmatprep.subr.bf16.mxu0 0
        %507 = vmatpush1.bf16.msra.mxu0 %v485
        %508 = vmatprep.subr.bf16.mxu0 0
        %509 = vmatpush1.bf16.msra.mxu0 %v486
        %510 = vmatprep.subr.bf16.mxu0 0
        %511 = vmatpush1.bf16.msra.mxu0 %v487
        %512 = vmatprep.subr.bf16.mxu0 0
        %513 = vmatpush1.bf16.msra.mxu0 0
        %514 = vmatprep.subr.bf16.mxu0 0
        %515 = vmatpush1.bf16.msra.mxu0 0
        %516 = vmatprep.subr.bf16.mxu0 0
        %517 = vmatpush1.bf16.msra.mxu0 0
        %518 = vmatprep.subr.bf16.mxu0 0
        %519 = vmatpush1.bf16.msra.mxu0 0
        %520 = vmatprep.subr.bf16.mxu0 0
        %521 = vmatpush1.bf16.msra.mxu0 0
        %522 = vmatprep.subr.bf16.mxu0 0
        %523 = vmatpush1.bf16.msra.mxu0 0
        %524 = vmatprep.subr.bf16.mxu0 0
        %525 = vmatpush1.bf16.msra.mxu0 0
        %526 = vmatprep.subr.bf16.mxu0 0
        %527 = vmatpush1.bf16.msra.mxu0 0
        %528 = vmatprep.mubr.bf16.mxu0 0
        %529 = vmatmul.mubr.bf16.gmra.mrb[0].mxu0 %v432
        %v530 = vpop.f32.mrb[0].mxu0
        %v531 = vadd.f32 0.0, %v530
        %v532 = vpop.f32.mrb[0].mxu0
        %v533 = vpop.f32.mrb[0].mxu0
        %v534 = vadd.f32 0.0, %v533
        %v535 = vpop.f32.mrb[0].mxu0
        %536 = vmatprep.mubr.bf16.mxu0 0
        %537 = vmatmul.mubr.bf16.gmra.mrb[0].mxu0 %v433
        %v538 = vpop.f32.mrb[0].mxu0
        %v539 = vadd.f32 0.0, %v538
        %v540 = vpop.f32.mrb[0].mxu0
        %v541 = vpop.f32.mrb[0].mxu0
        %v542 = vadd.f32 0.0, %v541
        %v543 = vpop.f32.mrb[0].mxu0
        %544 = vmatprep.mubr.bf16.mxu0 0
        %545 = vmatmul.mubr.bf16.gmra.mrb[0].mxu0 %v434
        %v546 = vpop.f32.mrb[0].mxu0
        %v547 = vadd.f32 0.0, %v546
        %v548 = vpop.f32.mrb[0].mxu0
        %v549 = vpop.f32.mrb[0].mxu0
        %v550 = vadd.f32 0.0, %v549
        %v551 = vpop.f32.mrb[0].mxu0
        %552 = vmatprep.mubr.bf16.mxu0 0
        %553 = vmatmul.mubr.bf16.gmra.mrb[0].mxu0 %v435
        %v554 = vpop.f32.mrb[0].mxu0
        %v555 = vadd.f32 0.0, %v554
        %v556 = vpop.f32.mrb[0].mxu0
        %v557 = vpop.f32.mrb[0].mxu0
        %v558 = vadd.f32 0.0, %v557
        %v559 = vpop.f32.mrb[0].mxu0
        %560 = vmatprep.mubr.bf16.mxu0 0
        %561 = vmatmul.mubr.bf16.gmra.mrb[0].mxu0 %v436
        %v562 = vpop.f32.mrb[0].mxu0
        %v563 = vadd.f32 0.0, %v562
        %v564 = vpop.f32.mrb[0].mxu0
        %v565 = vpop.f32.mrb[0].mxu0
        %v566 = vadd.f32 0.0, %v565
        %v567 = vpop.f32.mrb[0].mxu0
        %568 = vmatprep.mubr.bf16.mxu0 0
        %569 = vmatmul.mubr.bf16.gmra.mrb[0].mxu0 %v437
        %v570 = vpop.f32.mrb[0].mxu0
        %v571 = vadd.f32 0.0, %v570
        %v572 = vpop.f32.mrb[0].mxu0
        %v573 = vpop.f32.mrb[0].mxu0
        %v574 = vadd.f32 0.0, %v573
        %v575 = vpop.f32.mrb[0].mxu0
        %576 = vmatprep.mubr.bf16.mxu0 0
        %577 = vmatmul.mubr.bf16.gmra.mrb[0].mxu0 %v438
        %v578 = vpop.f32.mrb[0].mxu0
        %v579 = vadd.f32 0.0, %v578
        %v580 = vpop.f32.mrb[0].mxu0
        %v581 = vpop.f32.mrb[0].mxu0
        %v582 = vadd.f32 0.0, %v581
        %v583 = vpop.f32.mrb[0].mxu0
        %584 = vmatprep.mubr.bf16.mxu0 0
        %585 = vmatmul.mubr.bf16.gmra.mrb[0].mxu0 %v439
        %v586 = vpop.f32.mrb[0].mxu0
        %v587 = vadd.f32 0.0, %v586
        %v588 = vpop.f32.mrb[0].mxu0
        %v589 = vpop.f32.mrb[0].mxu0
        %v590 = vadd.f32 0.0, %v589
        %v591 = vpop.f32.mrb[0].mxu0
        %592 = vdwg.mxu0
        %v593 = vadd.f32 %v352, %v531
        %v594 = vadd.f32 %v353, %v534
        %v595 = vadd.f32 %v354, %v539
        %v596 = vadd.f32 %v355, %v542
        %v597 = vadd.f32 %v356, %v547
        %v598 = vadd.f32 %v357, %v550
        %v599 = vadd.f32 %v358, %v555
        %v600 = vadd.f32 %v359, %v558
        %v601 = vadd.f32 %v360, %v563
        %v602 = vadd.f32 %v361, %v566
        %v603 = vadd.f32 %v362, %v571
        %v604 = vadd.f32 %v363, %v574
        %v605 = vadd.f32 %v364, %v579
        %v606 = vadd.f32 %v365, %v582
        %v607 = vadd.f32 %v366, %v587
        %v608 = vadd.f32 %v367, %v590
        %609 = vst [vmem:[#allocation2] sm:$0xff] %v593
        %610 = vst [vmem:[#allocation2 + $0x8] sm:$0xff] %v594
        %611 = vst [vmem:[#allocation2 + $0x10] sm:$0xff] %v595
        %612 = vst [vmem:[#allocation2 + $0x18] sm:$0xff] %v596
        %613 = vst [vmem:[#allocation2 + $0x20] sm:$0xff] %v597
        %614 = vst [vmem:[#allocation2 + $0x28] sm:$0xff] %v598
        %615 = vst [vmem:[#allocation2 + $0x30] sm:$0xff] %v599
        %616 = vst [vmem:[#allocation2 + $0x38] sm:$0xff] %v600
        %617 = vst [vmem:[#allocation2 + $0x40] sm:$0xff] %v601
        %618 = vst [vmem:[#allocation2 + $0x48] sm:$0xff] %v602
        %619 = vst [vmem:[#allocation2 + $0x50] sm:$0xff] %v603
        %620 = vst [vmem:[#allocation2 + $0x58] sm:$0xff] %v604
        %621 = vst [vmem:[#allocation2 + $0x60] sm:$0xff] %v605
        %622 = vst [vmem:[#allocation2 + $0x68] sm:$0xff] %v606
        %623 = vst [vmem:[#allocation2 + $0x70] sm:$0xff] %v607
        %624 = vst [vmem:[#allocation2 + $0x78] sm:$0xff] %v608
        %p625 = scmp.eq.s32.totalorder %s31, 2
        // Predicated region
        $region61: #{tpu_custom_call.1} parent=39 // pred_check
          %p626 = pneg %p625
        $region62: #{tpu_custom_call.1} parent=39 // pred_check_branch
          %628 = sbr.rel (%p626) target = $region64
        $region63: #{tpu_custom_call.1} parent=39 // pred_region
          %v629 = vld [vmem:[#allocation2] sm:$0xff]
          %v630 = vld [vmem:[#allocation2 + $0x8] sm:$0xff]
          %v631 = vld [vmem:[#allocation2 + $0x10] sm:$0xff]
          %v632 = vld [vmem:[#allocation2 + $0x18] sm:$0xff]
          %v633 = vld [vmem:[#allocation2 + $0x20] sm:$0xff]
          %v634 = vld [vmem:[#allocation2 + $0x28] sm:$0xff]
          %v635 = vld [vmem:[#allocation2 + $0x30] sm:$0xff]
          %v636 = vld [vmem:[#allocation2 + $0x38] sm:$0xff]
          %v637 = vld [vmem:[#allocation2 + $0x40] sm:$0xff]
          %v638 = vld [vmem:[#allocation2 + $0x48] sm:$0xff]
          %v639 = vld [vmem:[#allocation2 + $0x50] sm:$0xff]
          %v640 = vld [vmem:[#allocation2 + $0x58] sm:$0xff]
          %v641 = vld [vmem:[#allocation2 + $0x60] sm:$0xff]
          %v642 = vld [vmem:[#allocation2 + $0x68] sm:$0xff]
          %v643 = vld [vmem:[#allocation2 + $0x70] sm:$0xff]
          %v644 = vld [vmem:[#allocation2 + $0x78] sm:$0xff]
          %v645 = vld [vmem:[#allocation8] sm:$0xff]
          %v646 = vld [vmem:[#allocation8 + $0x8] sm:$0xff]
          %v647 = vld [vmem:[#allocation8 + $0x10] sm:$0xff]
          %v648 = vld [vmem:[#allocation8 + $0x18] sm:$0xff]
          %v649 = vld [vmem:[#allocation8 + $0x20] sm:$0xff]
          %v650 = vld [vmem:[#allocation8 + $0x28] sm:$0xff]
          %v651 = vld [vmem:[#allocation8 + $0x30] sm:$0xff]
          %v652 = vld [vmem:[#allocation8 + $0x38] sm:$0xff]
          %v653 = vld [vmem:[#allocation8 + $0x40] sm:$0xff]
          %v654 = vld [vmem:[#allocation8 + $0x48] sm:$0xff]
          %v655 = vld [vmem:[#allocation8 + $0x50] sm:$0xff]
          %v656 = vld [vmem:[#allocation8 + $0x58] sm:$0xff]
          %v657 = vld [vmem:[#allocation8 + $0x60] sm:$0xff]
          %v658 = vld [vmem:[#allocation8 + $0x68] sm:$0xff]
          %v659 = vld [vmem:[#allocation8 + $0x70] sm:$0xff]
          %v660 = vld [vmem:[#allocation8 + $0x78] sm:$0xff]
          %v661 = vld [vmem:[%s3] sm:$0x1]
          %v663 = vlaneseq
          %v664 = vshrl.u32 %v663, 7
          %v665 = vsub.s32 0, %v664
          %v666 = vrot.slane %v661, %v665
          %668 = vmatprep.subr.mxu0 0.0
          %669 = vmatpush1.msra.mxu0 %v645
          %670 = vmatprep.subr.mxu0 0.0
          %671 = vmatpush1.msra.mxu0 %v646
          %672 = vmatprep.subr.mxu0 0.0
          %673 = vmatpush1.msra.mxu0 %v647
          %674 = vmatprep.subr.mxu0 0.0
          %675 = vmatpush1.msra.mxu0 %v648
          %676 = vmatprep.subr.mxu0 0.0
          %677 = vmatpush1.msra.mxu0 %v649
          %678 = vmatprep.subr.mxu0 0.0
          %679 = vmatpush1.msra.mxu0 %v650
          %680 = vmatprep.subr.mxu0 0.0
          %681 = vmatpush1.msra.mxu0 %v651
          %682 = vmatprep.subr.mxu0 0.0
          %683 = vmatpush1.msra.mxu0 %v652
          %684 = vmatprep.subr.mxu0 0.0
          %685 = vmatpush1.msra.mxu0 %v653
          %686 = vmatprep.subr.mxu0 0.0
          %687 = vmatpush1.msra.mxu0 %v654
          %688 = vmatprep.subr.mxu0 0.0
          %689 = vmatpush1.msra.mxu0 %v655
          %690 = vmatprep.subr.mxu0 0.0
          %691 = vmatpush1.msra.mxu0 %v656
          %692 = vmatprep.subr.mxu0 0.0
          %693 = vmatpush1.msra.mxu0 %v657
          %694 = vmatprep.subr.mxu0 0.0
          %695 = vmatpush1.msra.mxu0 %v658
          %696 = vmatprep.subr.mxu0 0.0
          %697 = vmatpush1.msra.mxu0 %v659
          %698 = vmatprep.subr.mxu0 0.0
          %699 = vmatpush1.msra.mxu0 %v660
          %700 = vmatprep.subr.mxu0 0.0
          %701 = vmatpush1.msra.mxu0 0.0
          %702 = vmatprep.subr.mxu0 0.0
          %703 = vmatpush1.msra.mxu0 0.0
          %704 = vmatprep.subr.mxu0 0.0
          %705 = vmatpush1.msra.mxu0 0.0
          %706 = vmatprep.subr.mxu0 0.0
          %707 = vmatpush1.msra.mxu0 0.0
          %708 = vmatprep.subr.mxu0 0.0
          %709 = vmatpush1.msra.mxu0 0.0
          %710 = vmatprep.subr.mxu0 0.0
          %711 = vmatpush1.msra.mxu0 0.0
          %712 = vmatprep.subr.mxu0 0.0
          %713 = vmatpush1.msra.mxu0 0.0
          %714 = vmatprep.subr.mxu0 0.0
          %715 = vmatpush1.msra.mxu0 0.0
          %716 = vmatprep.subr.mxu0 0.0
          %717 = vmatpush1.msra.mxu0 0.0
          %718 = vmatprep.subr.mxu0 0.0
          %719 = vmatpush1.msra.mxu0 0.0
          %720 = vmatprep.subr.mxu0 0.0
          %721 = vmatpush1.msra.mxu0 0.0
          %722 = vmatprep.subr.mxu0 0.0
          %723 = vmatpush1.msra.mxu0 0.0
          %724 = vmatprep.subr.mxu0 0.0
          %725 = vmatpush1.msra.mxu0 0.0
          %726 = vmatprep.subr.mxu0 0.0
          %727 = vmatpush1.msra.mxu0 0.0
          %728 = vmatprep.subr.mxu0 0.0
          %729 = vmatpush1.msra.mxu0 0.0
          %730 = vmatprep.subr.mxu0 0.0
          %731 = vmatpush1.msra.mxu0 0.0
          %732 = vmatprep.mubr.f32.mxu0 0.0
          %733 = vmatmul.mubr.f32.gmra.mrb[0].mxu0 %v629
          %v734 = vpop.f32.mrb[0].mxu0
          %v735 = vadd.f32 %v666, %v734
          %v736 = vpop.f32.mrb[0].mxu0
          %737 = vmatprep.mubr.f32.mxu0 0.0
          %738 = vmatmul.mubr.f32.gmra.mrb[0].mxu0 %v630
          %v739 = vpop.f32.mrb[0].mxu0
          %v740 = vadd.f32 %v666, %v739
          %v741 = vpop.f32.mrb[0].mxu0
          %742 = vmatprep.mubr.f32.mxu0 0.0
          %743 = vmatmul.mubr.f32.gmra.mrb[0].mxu0 %v631
          %v744 = vpop.f32.mrb[0].mxu0
          %v745 = vadd.f32 %v666, %v744
          %v746 = vpop.f32.mrb[0].mxu0
          %747 = vmatprep.mubr.f32.mxu0 0.0
          %748 = vmatmul.mubr.f32.gmra.mrb[0].mxu0 %v632
          %v749 = vpop.f32.mrb[0].mxu0
          %v750 = vadd.f32 %v666, %v749
          %v751 = vpop.f32.mrb[0].mxu0
          %752 = vmatprep.mubr.f32.mxu0 0.0
          %753 = vmatmul.mubr.f32.gmra.mrb[0].mxu0 %v633
          %v754 = vpop.f32.mrb[0].mxu0
          %v755 = vadd.f32 %v666, %v754
          %v756 = vpop.f32.mrb[0].mxu0
          %757 = vmatprep.mubr.f32.mxu0 0.0
          %758 = vmatmul.mubr.f32.gmra.mrb[0].mxu0 %v634
          %v759 = vpop.f32.mrb[0].mxu0
          %v760 = vadd.f32 %v666, %v759
          %v761 = vpop.f32.mrb[0].mxu0
          %762 = vmatprep.mubr.f32.mxu0 0.0
          %763 = vmatmul.mubr.f32.gmra.mrb[0].mxu0 %v635
          %v764 = vpop.f32.mrb[0].mxu0
          %v765 = vadd.f32 %v666, %v764
          %v766 = vpop.f32.mrb[0].mxu0
          %767 = vmatprep.mubr.f32.mxu0 0.0
          %768 = vmatmul.mubr.f32.gmra.mrb[0].mxu0 %v636
          %v769 = vpop.f32.mrb[0].mxu0
          %v770 = vadd.f32 %v666, %v769
          %v771 = vpop.f32.mrb[0].mxu0
          %772 = vmatprep.mubr.f32.mxu0 0.0
          %773 = vmatmul.mubr.f32.gmra.mrb[0].mxu0 %v637
          %v774 = vpop.f32.mrb[0].mxu0
          %v775 = vadd.f32 %v666, %v774
          %v776 = vpop.f32.mrb[0].mxu0
          %777 = vmatprep.mubr.f32.mxu0 0.0
          %778 = vmatmul.mubr.f32.gmra.mrb[0].mxu0 %v638
          %v779 = vpop.f32.mrb[0].mxu0
          %v780 = vadd.f32 %v666, %v779
          %v781 = vpop.f32.mrb[0].mxu0
          %782 = vmatprep.mubr.f32.mxu0 0.0
          %783 = vmatmul.mubr.f32.gmra.mrb[0].mxu0 %v639
          %v784 = vpop.f32.mrb[0].mxu0
          %v785 = vadd.f32 %v666, %v784
          %v786 = vpop.f32.mrb[0].mxu0
          %787 = vmatprep.mubr.f32.mxu0 0.0
          %788 = vmatmul.mubr.f32.gmra.mrb[0].mxu0 %v640
          %v789 = vpop.f32.mrb[0].mxu0
          %v790 = vadd.f32 %v666, %v789
          %v791 = vpop.f32.mrb[0].mxu0
          %792 = vmatprep.mubr.f32.mxu0 0.0
          %793 = vmatmul.mubr.f32.gmra.mrb[0].mxu0 %v641
          %v794 = vpop.f32.mrb[0].mxu0
          %v795 = vadd.f32 %v666, %v794
          %v796 = vpop.f32.mrb[0].mxu0
          %797 = vmatprep.mubr.f32.mxu0 0.0
          %798 = vmatmul.mubr.f32.gmra.mrb[0].mxu0 %v642
          %v799 = vpop.f32.mrb[0].mxu0
          %v800 = vadd.f32 %v666, %v799
          %v801 = vpop.f32.mrb[0].mxu0
          %802 = vmatprep.mubr.f32.mxu0 0.0
          %803 = vmatmul.mubr.f32.gmra.mrb[0].mxu0 %v643
          %v804 = vpop.f32.mrb[0].mxu0
          %v805 = vadd.f32 %v666, %v804
          %v806 = vpop.f32.mrb[0].mxu0
          %807 = vmatprep.mubr.f32.mxu0 0.0
          %808 = vmatmul.mubr.f32.gmra.mrb[0].mxu0 %v644
          %v809 = vpop.f32.mrb[0].mxu0
          %v810 = vadd.f32 %v666, %v809
          %v811 = vpop.f32.mrb[0].mxu0
          %812 = vdwg.mxu0
          %v813 = vmax.f32 %v735, 0.0
          %v814 = vmax.f32 %v740, 0.0
          %v815 = vmax.f32 %v745, 0.0
          %v816 = vmax.f32 %v750, 0.0
          %v817 = vmax.f32 %v755, 0.0
          %v818 = vmax.f32 %v760, 0.0
          %v819 = vmax.f32 %v765, 0.0
          %v820 = vmax.f32 %v770, 0.0
          %v821 = vmax.f32 %v775, 0.0
          %v822 = vmax.f32 %v780, 0.0
          %v823 = vmax.f32 %v785, 0.0
          %v824 = vmax.f32 %v790, 0.0
          %v825 = vmax.f32 %v795, 0.0
          %v826 = vmax.f32 %v800, 0.0
          %v827 = vmax.f32 %v805, 0.0
          %v828 = vmax.f32 %v810, 0.0
          %v829 = vld [vmem:[#allocation9] sm:$0xff]
          %v830 = vld [vmem:[#allocation9 + $0x8] sm:$0xff]
          %v831 = vld [vmem:[#allocation9 + $0x10] sm:$0xff]
          %v832 = vld [vmem:[#allocation9 + $0x18] sm:$0xff]
          %v833 = vld [vmem:[#allocation9 + $0x20] sm:$0xff]
          %v834 = vld [vmem:[#allocation9 + $0x28] sm:$0xff]
          %v835 = vld [vmem:[#allocation9 + $0x30] sm:$0xff]
          %v836 = vld [vmem:[#allocation9 + $0x38] sm:$0xff]
          %v837 = vld [vmem:[#allocation9 + $0x40] sm:$0xff]
          %v838 = vld [vmem:[#allocation9 + $0x48] sm:$0xff]
          %v839 = vld [vmem:[#allocation9 + $0x50] sm:$0xff]
          %v840 = vld [vmem:[#allocation9 + $0x58] sm:$0xff]
          %v841 = vld [vmem:[#allocation9 + $0x60] sm:$0xff]
          %v842 = vld [vmem:[#allocation9 + $0x68] sm:$0xff]
          %v843 = vld [vmem:[#allocation9 + $0x70] sm:$0xff]
          %v844 = vld [vmem:[#allocation9 + $0x78] sm:$0xff]
          %845 = vmatprep.subr.mxu0 0.0
          %846 = vmatpush1.msra.mxu0 %v829
          %847 = vmatprep.subr.mxu0 0.0
          %848 = vmatpush1.msra.mxu0 %v830
          %849 = vmatprep.subr.mxu0 0.0
          %850 = vmatpush1.msra.mxu0 %v831
          %851 = vmatprep.subr.mxu0 0.0
          %852 = vmatpush1.msra.mxu0 %v832
          %853 = vmatprep.subr.mxu0 0.0
          %854 = vmatpush1.msra.mxu0 %v833
          %855 = vmatprep.subr.mxu0 0.0
          %856 = vmatpush1.msra.mxu0 %v834
          %857 = vmatprep.subr.mxu0 0.0
          %858 = vmatpush1.msra.mxu0 %v835
          %859 = vmatprep.subr.mxu0 0.0
          %860 = vmatpush1.msra.mxu0 %v836
          %861 = vmatprep.subr.mxu0 0.0
          %862 = vmatpush1.msra.mxu0 %v837
          %863 = vmatprep.subr.mxu0 0.0
          %864 = vmatpush1.msra.mxu0 %v838
          %865 = vmatprep.subr.mxu0 0.0
          %866 = vmatpush1.msra.mxu0 %v839
          %867 = vmatprep.subr.mxu0 0.0
          %868 = vmatpush1.msra.mxu0 %v840
          %869 = vmatprep.subr.mxu0 0.0
          %870 = vmatpush1.msra.mxu0 %v841
          %871 = vmatprep.subr.mxu0 0.0
          %872 = vmatpush1.msra.mxu0 %v842
          %873 = vmatprep.subr.mxu0 0.0
          %874 = vmatpush1.msra.mxu0 %v843
          %875 = vmatprep.subr.mxu0 0.0
          %876 = vmatpush1.msra.mxu0 %v844
          %877 = vmatprep.subr.mxu0 0.0
          %878 = vmatpush1.msra.mxu0 0.0
          %879 = vmatprep.subr.mxu0 0.0
          %880 = vmatpush1.msra.mxu0 0.0
          %881 = vmatprep.subr.mxu0 0.0
          %882 = vmatpush1.msra.mxu0 0.0
          %883 = vmatprep.subr.mxu0 0.0
          %884 = vmatpush1.msra.mxu0 0.0
          %885 = vmatprep.subr.mxu0 0.0
          %886 = vmatpush1.msra.mxu0 0.0
          %887 = vmatprep.subr.mxu0 0.0
          %888 = vmatpush1.msra.mxu0 0.0
          %889 = vmatprep.subr.mxu0 0.0
          %890 = vmatpush1.msra.mxu0 0.0
          %891 = vmatprep.subr.mxu0 0.0
          %892 = vmatpush1.msra.mxu0 0.0
          %893 = vmatprep.subr.mxu0 0.0
          %894 = vmatpush1.msra.mxu0 0.0
          %895 = vmatprep.subr.mxu0 0.0
          %896 = vmatpush1.msra.mxu0 0.0
          %897 = vmatprep.subr.mxu0 0.0
          %898 = vmatpush1.msra.mxu0 0.0
          %899 = vmatprep.subr.mxu0 0.0
          %900 = vmatpush1.msra.mxu0 0.0
          %901 = vmatprep.subr.mxu0 0.0
          %902 = vmatpush1.msra.mxu0 0.0
          %903 = vmatprep.subr.mxu0 0.0
          %904 = vmatpush1.msra.mxu0 0.0
          %905 = vmatprep.subr.mxu0 0.0
          %906 = vmatpush1.msra.mxu0 0.0
          %907 = vmatprep.subr.mxu0 0.0
          %908 = vmatpush1.msra.mxu0 0.0
          %909 = vmatprep.mubr.f32.mxu0 0.0
          %910 = vmatmul.mubr.f32.gmra.mrb[0].mxu0 %v813
          %v911 = vpop.f32.mrb[0].mxu0
          %v912 = vadd.f32 0.0, %v911
          %v913 = vpop.f32.mrb[0].mxu0
          %914 = vmatprep.mubr.f32.mxu0 0.0
          %915 = vmatmul.mubr.f32.gmra.mrb[0].mxu0 %v814
          %v916 = vpop.f32.mrb[0].mxu0
          %v917 = vadd.f32 0.0, %v916
          %v918 = vpop.f32.mrb[0].mxu0
          %919 = vmatprep.mubr.f32.mxu0 0.0
          %920 = vmatmul.mubr.f32.gmra.mrb[0].mxu0 %v815
          %v921 = vpop.f32.mrb[0].mxu0
          %v922 = vadd.f32 0.0, %v921
          %v923 = vpop.f32.mrb[0].mxu0
          %924 = vmatprep.mubr.f32.mxu0 0.0
          %925 = vmatmul.mubr.f32.gmra.mrb[0].mxu0 %v816
          %v926 = vpop.f32.mrb[0].mxu0
          %v927 = vadd.f32 0.0, %v926
          %v928 = vpop.f32.mrb[0].mxu0
          %929 = vmatprep.mubr.f32.mxu0 0.0
          %930 = vmatmul.mubr.f32.gmra.mrb[0].mxu0 %v817
          %v931 = vpop.f32.mrb[0].mxu0
          %v932 = vadd.f32 0.0, %v931
          %v933 = vpop.f32.mrb[0].mxu0
          %934 = vmatprep.mubr.f32.mxu0 0.0
          %935 = vmatmul.mubr.f32.gmra.mrb[0].mxu0 %v818
          %v936 = vpop.f32.mrb[0].mxu0
          %v937 = vadd.f32 0.0, %v936
          %v938 = vpop.f32.mrb[0].mxu0
          %939 = vmatprep.mubr.f32.mxu0 0.0
          %940 = vmatmul.mubr.f32.gmra.mrb[0].mxu0 %v819
          %v941 = vpop.f32.mrb[0].mxu0
          %v942 = vadd.f32 0.0, %v941
          %v943 = vpop.f32.mrb[0].mxu0
          %944 = vmatprep.mubr.f32.mxu0 0.0
          %945 = vmatmul.mubr.f32.gmra.mrb[0].mxu0 %v820
          %v946 = vpop.f32.mrb[0].mxu0
          %v947 = vadd.f32 0.0, %v946
          %v948 = vpop.f32.mrb[0].mxu0
          %949 = vmatprep.mubr.f32.mxu0 0.0
          %950 = vmatmul.mubr.f32.gmra.mrb[0].mxu0 %v821
          %v951 = vpop.f32.mrb[0].mxu0
          %v952 = vadd.f32 0.0, %v951
          %v953 = vpop.f32.mrb[0].mxu0
          %954 = vmatprep.mubr.f32.mxu0 0.0
          %955 = vmatmul.mubr.f32.gmra.mrb[0].mxu0 %v822
          %v956 = vpop.f32.mrb[0].mxu0
          %v957 = vadd.f32 0.0, %v956
          %v958 = vpop.f32.mrb[0].mxu0
          %959 = vmatprep.mubr.f32.mxu0 0.0
          %960 = vmatmul.mubr.f32.gmra.mrb[0].mxu0 %v823
          %v961 = vpop.f32.mrb[0].mxu0
          %v962 = vadd.f32 0.0, %v961
          %v963 = vpop.f32.mrb[0].mxu0
          %964 = vmatprep.mubr.f32.mxu0 0.0
          %965 = vmatmul.mubr.f32.gmra.mrb[0].mxu0 %v824
          %v966 = vpop.f32.mrb[0].mxu0
          %v967 = vadd.f32 0.0, %v966
          %v968 = vpop.f32.mrb[0].mxu0
          %969 = vmatprep.mubr.f32.mxu0 0.0
          %970 = vmatmul.mubr.f32.gmra.mrb[0].mxu0 %v825
          %v971 = vpop.f32.mrb[0].mxu0
          %v972 = vadd.f32 0.0, %v971
          %v973 = vpop.f32.mrb[0].mxu0
          %974 = vmatprep.mubr.f32.mxu0 0.0
          %975 = vmatmul.mubr.f32.gmra.mrb[0].mxu0 %v826
          %v976 = vpop.f32.mrb[0].mxu0
          %v977 = vadd.f32 0.0, %v976
          %v978 = vpop.f32.mrb[0].mxu0
          %979 = vmatprep.mubr.f32.mxu0 0.0
          %980 = vmatmul.mubr.f32.gmra.mrb[0].mxu0 %v827
          %v981 = vpop.f32.mrb[0].mxu0
          %v982 = vadd.f32 0.0, %v981
          %v983 = vpop.f32.mrb[0].mxu0
          %984 = vmatprep.mubr.f32.mxu0 0.0
          %985 = vmatmul.mubr.f32.gmra.mrb[0].mxu0 %v828
          %v986 = vpop.f32.mrb[0].mxu0
          %v987 = vadd.f32 0.0, %v986
          %v988 = vpop.f32.mrb[0].mxu0
          %989 = vdwg.mxu0
          %v990 = vpack.c.bf16 %v917, %v912
          %v991 = vpack.c.bf16 %v927, %v922
          %v992 = vpack.c.bf16 %v937, %v932
          %v993 = vpack.c.bf16 %v947, %v942
          %v994 = vpack.c.bf16 %v957, %v952
          %v995 = vpack.c.bf16 %v967, %v962
          %v996 = vpack.c.bf16 %v977, %v972
          %v997 = vpack.c.bf16 %v987, %v982
          %v1006 = vunpack.c.l.b16 %v990
          %v1007 = vunpack.c.h.b16 %v990
          %v1008 = vunpack.c.l.b16 %v991
          %v1009 = vunpack.c.h.b16 %v991
          %v1010 = vunpack.c.l.b16 %v992
          %v1011 = vunpack.c.h.b16 %v992
          %v1012 = vunpack.c.l.b16 %v993
          %v1013 = vunpack.c.h.b16 %v993
          %v1014 = vunpack.c.l.b16 %v994
          %v1015 = vunpack.c.h.b16 %v994
          %v1016 = vunpack.c.l.b16 %v995
          %v1017 = vunpack.c.h.b16 %v995
          %v1018 = vunpack.c.l.b16 %v996
          %v1019 = vunpack.c.h.b16 %v996
          %v1020 = vunpack.c.l.b16 %v997
          %v1021 = vunpack.c.h.b16 %v997
          %v1022 = vpack.c.b16 %v1006, %v1006
          %v1023 = vpack.c.b16 %v1007, %v1007
          %v1024 = vpack.c.b16 %v1008, %v1008
          %v1025 = vpack.c.b16 %v1009, %v1009
          %v1026 = vpack.c.b16 %v1010, %v1010
          %v1027 = vpack.c.b16 %v1011, %v1011
          %v1028 = vpack.c.b16 %v1012, %v1012
          %v1029 = vpack.c.b16 %v1013, %v1013
          %v1030 = vpack.c.b16 %v1014, %v1014
          %v1031 = vpack.c.b16 %v1015, %v1015
          %v1032 = vpack.c.b16 %v1016, %v1016
          %v1033 = vpack.c.b16 %v1017, %v1017
          %v1034 = vpack.c.b16 %v1018, %v1018
          %v1035 = vpack.c.b16 %v1019, %v1019
          %v1036 = vpack.c.b16 %v1020, %v1020
          %v1037 = vpack.c.b16 %v1021, %v1021
          %1054 = vst [vmem:[%s327] sm:$0xf] %v1022
          %1055 = vst [vmem:[%s327 + $0x4] sm:$0xf] %v1023
          %1056 = vst [vmem:[%s327 + $0x8] sm:$0xf] %v1024
          %1057 = vst [vmem:[%s327 + $0xc] sm:$0xf] %v1025
          %1058 = vst [vmem:[%s327 + $0x10] sm:$0xf] %v1026
          %1059 = vst [vmem:[%s327 + $0x14] sm:$0xf] %v1027
          %1060 = vst [vmem:[%s327 + $0x18] sm:$0xf] %v1028
          %1061 = vst [vmem:[%s327 + $0x1c] sm:$0xf] %v1029
          %1062 = vst [vmem:[%s327 + $0x20] sm:$0xf] %v1030
          %1063 = vst [vmem:[%s327 + $0x24] sm:$0xf] %v1031
          %1064 = vst [vmem:[%s327 + $0x28] sm:$0xf] %v1032
          %1065 = vst [vmem:[%s327 + $0x2c] sm:$0xf] %v1033
          %1066 = vst [vmem:[%s327 + $0x30] sm:$0xf] %v1034
          %1067 = vst [vmem:[%s327 + $0x34] sm:$0xf] %v1035
          %1068 = vst [vmem:[%s327 + $0x38] sm:$0xf] %v1036
          %1069 = vst [vmem:[%s327 + $0x3c] sm:$0xf] %v1037
        $region64: #{tpu_custom_call.1} parent=39 // pred_fallthru
          _
        %s1070 = sand.u32 %s163, 1
        %s1071 = scalar_lea.sflag [#allocation5], %s1070
        %s1072 = sand.u32 %s163, 1
        %s1073 = smul.addr %s1072, 64
        %s1074 = scalar_lea.vmem [#allocation11], %s1073
        // Predicated region
        $region65: #{tpu_custom_call.1} parent=39 // pred_check
          %p1075 = pneg %p173
        $region66: #{tpu_custom_call.1} parent=39 // pred_check_branch
          %1077 = sbr.rel (%p1075) target = $region68
        $region67: #{tpu_custom_call.1} parent=39 // pred_region
          %s1078 = smul.u32 16, %s30
          %s1080 = ssub.s32 1024, 1024
          %1081 = vsyncadd %s1071, %s1080
          %s1082 = smul.addr %s1078, 64
          %s1083 = scalar_lea.hbm %s5, %s1082
          %s1084 = sshll.u32 %s1074, 4
          %s1085 = int_to_ptr.vmem [resolvable:$true] %s1084
          %1090 = dma.vmem_to_hbm [thread:$0]  %s1085, 1024, %s1083, %s1071, 64, 64, 4
        $region68: #{tpu_custom_call.1} parent=39 // pred_fallthru
          _
      $region40: #{tpu_custom_call.1} parent=5 // pred_fallthru
        _
      %p1091 = scmp.le.s32.totalorder 2, %s21
      // Predicated region
      $region69: #{tpu_custom_call.1} parent=5 // pred_check
        %p1092 = pneg %p1091
      $region70: #{tpu_custom_call.1} parent=5 // pred_check_branch
        %1094 = sbr.rel (%p1092) target = $region72
      $region71: #{tpu_custom_call.1} parent=5 // pred_region
        %s1095 = ssub.s32 %s21, 2
        // Predicated region
        $region73: #{tpu_custom_call.1} parent=71 // pred_check
          %p1096 = pneg %p179
        $region74: #{tpu_custom_call.1} parent=71 // pred_check_branch
          %1098 = sbr.rel (%p1096) target = $region76
        $region75: #{tpu_custom_call.1} parent=71 // pred_region
          %s1099 = sand.u32 %s164, 1
          %s1100 = scalar_lea.sflag [#allocation5], %s1099
          %s1101 = sand.u32 %s164, 1
          %s1102 = smul.addr %s1101, 64
          %s1103 = scalar_lea.vmem [#allocation11], %s1102
          %1104 = dma.done %s1100, 1024
        $region76: #{tpu_custom_call.1} parent=71 // pred_fallthru
          _
      $region72: #{tpu_custom_call.1} parent=5 // pred_fallthru
        _
    $region6: #{tpu_custom_call.1} parent=1 // loop_footer
      %s25 = sadd.s32 1, %s21
    $region7: #{tpu_custom_call.1} parent=1 // loop_footer_branch
      %20 = sbr.rel target = $region3
    $region8: #{tpu_custom_call.1} parent=1 // loop_exit
      _
    %1105 = vsyncpa [#allocation4], 1
    %s1106 = scalar_lea.sflag [#allocation4], 1
    %1107 = vsyncpa %s1106, 1
    %1108 = vsyncpa [#allocation7], 1
    %s1109 = scalar_lea.sflag [#allocation7], 1
    %1110 = vsyncpa %s1109, 1
    %1111 = vsyncpa [#allocation10], 1
    %1112 = vsyncpa [#allocation5], 1
    %s1113 = scalar_lea.sflag [#allocation5], 1
    %1114 = vsyncpa %s1113, 1

</llo_original>
